<compile_context>
chip_gen: v7x
topology: tpu7x:2x2x1
jax: 0.10.0
libtpu: 0.0.40
codegen_flags: <defaults>
</compile_context>

<pallas_src>
import jax
import jax.numpy as jnp
from jax.experimental import pallas as pl
from jax.experimental.pallas import tpu as pltpu


def _sq_diff_sum(x, axis):
    """sum((x[..., i+1, ...] - x[..., i, ...])**2) along `axis` (x is f32)."""
    n = x.shape[axis]
    if n <= 1:
        return jnp.float32(0.0)
    lane_aligned = x.shape[-1] % 128 == 0
    sub_aligned = x.shape[-2] % 8 == 0
    use_roll = (axis == x.ndim - 1 and lane_aligned) or (
        axis == x.ndim - 2 and sub_aligned and lane_aligned
    )
    if use_roll:
        # shifted[..., i, ...] == x[..., (i + 1) % n, ...]  (jnp.roll convention)
        shifted = pltpu.roll(x, shift=n - 1, axis=axis)
        d = shifted - x
        idx = jax.lax.broadcasted_iota(jnp.int32, x.shape, axis)
        d = jnp.where(idx < n - 1, d, 0.0)   # zero the wrap-around term
    else:
        d = jax.lax.slice_in_dim(x, 1, n, axis=axis) - jax.lax.slice_in_dim(
            x, 0, n - 1, axis=axis
        )
    return jnp.sum(d * d)


def _tv_kernel(x_ref, h_ref, w_ref):
    # x_ref block: (TBC, H, W) in the input dtype; cast once to f32.
    x = x_ref[...].astype(jnp.float32)
    h_sum = _sq_diff_sum(x, axis=1)   # vertical (height) diffs
    w_sum = _sq_diff_sum(x, axis=2)   # horizontal (width) diffs
    # Lane-dense full-vreg stores of the per-block partial sums.
    h_ref[...] = jnp.broadcast_to(h_sum, h_ref.shape)
    w_ref[...] = jnp.broadcast_to(w_sum, w_ref.shape)


def _pick_block(n_slices, slice_f32_bytes, target_bytes):
    """Number of (H, W) slices per block: ~target_bytes of f32 per block."""
    budget = max(1, min(n_slices, target_bytes // max(1, slice_f32_bytes)))
    tbc = budget
    while n_slices % tbc:                 # prefer an exact divisor (no padding)
        tbc -= 1
    if tbc * 4 < budget:                  # e.g. prime n_slices: pad instead
        return budget
    return tbc


def tv_loss(x, tv_loss_weight=1.0, *, block_bytes=2 * 1024 * 1024):
    """Pallas equivalent of TVLoss.forward(x) for x of shape (B, C, H, W)."""
    B, C, H, W = x.shape
    N = B * C
    xr = x.reshape(N, H, W)

    tbc = _pick_block(N, H * W * 4, block_bytes)
    G = -(-N // tbc)                      # ceil-div: number of grid steps
    pad = G * tbc - N
    if pad:
        # Zero slices contribute 0 to both sums; counts use the original shape.
        xr = jnp.concatenate([xr, jnp.zeros((pad, H, W), xr.dtype)], axis=0)

    flops = 6 * N * H * W
    bytes_accessed = G * tbc * H * W * x.dtype.itemsize + 2 * G * 8 * 128 * 4

    h_parts, w_parts = pl.pallas_call(
        _tv_kernel,
        out_shape=(
            jax.ShapeDtypeStruct((G, 8, 128), jnp.float32),
            jax.ShapeDtypeStruct((G, 8, 128), jnp.float32),
        ),
        grid_spec=pltpu.PrefetchScalarGridSpec(
            num_scalar_prefetch=0,
            grid=(G,),
            in_specs=[pl.BlockSpec((tbc, H, W), lambda i: (i, 0, 0))],
            out_specs=(
                pl.BlockSpec((1, 8, 128), lambda i: (i, 0, 0)),
                pl.BlockSpec((1, 8, 128), lambda i: (i, 0, 0)),
            ),
        ),
        compiler_params=pltpu.CompilerParams(
            dimension_semantics=("parallel",),
        ),
        cost_estimate=pl.CostEstimate(
            flops=int(flops), transcendentals=0, bytes_accessed=int(bytes_accessed)
        ),
    )(xr)

    h_tv = jnp.sum(h_parts[:, 0, 0])
    w_tv = jnp.sum(w_parts[:, 0, 0])

    # Counts match PyTorch's tensor_size of the sliced tensors.
    count_h = C * (H - 1) * W
    count_w = C * H * (W - 1)
    return tv_loss_weight * 2.0 * (h_tv / count_h + w_tv / count_w) / B


def _tv_loss_ref(x, tv_loss_weight=1.0):
    B, C, H, W = x.shape
    xf = x.astype(jnp.float32)
    count_h = C * (H - 1) * W
    count_w = C * H * (W - 1)
    h_tv = jnp.sum((xf[:, :, 1:, :] - xf[:, :, :-1, :]) ** 2)
    w_tv = jnp.sum((xf[:, :, :, 1:] - xf[:, :, :, :-1]) ** 2)
    return tv_loss_weight * 2.0 * (h_tv / count_h + w_tv / count_w) / B


if __name__ == "__main__":
    key = jax.random.PRNGKey(0)

    # Case 1: the spec shape (single block, G == 1).
    B, C, H, W = 2, 4, 16, 16
    x = jax.random.normal(key, (B, C, H, W), dtype=jnp.float32)
    out = jax.block_until_ready(tv_loss(x, tv_loss_weight=1.0))
    ref = _tv_loss_ref(x, tv_loss_weight=1.0)
    assert jnp.allclose(out, ref, rtol=1e-5, atol=1e-5), (out, ref)

    # Case 2: multi-block grid exercising the parallel partial-sum reduction.
    key2 = jax.random.PRNGKey(1)
    x2 = jax.random.normal(key2, (2, 3, 24, 16), dtype=jnp.float32)
    out2 = jax.block_until_ready(tv_loss(x2, tv_loss_weight=0.5, block_bytes=4096))
    ref2 = _tv_loss_ref(x2, tv_loss_weight=0.5)
    assert jnp.allclose(out2, ref2, rtol=1e-5, atol=1e-5), (out2, ref2)

    print("KERNEL_OK")
</pallas_src>

<mosaic_0001>
module attributes {stable_mosaic.version = 11 : i64} {
  func.func @_tv_kernel(%arg0: i32, %arg1: memref<8x16x16xf32, #tpu.memory_space<vmem>>, %arg2: memref<1x8x128xf32, #tpu.memory_space<vmem>>, %arg3: memref<1x8x128xf32, #tpu.memory_space<vmem>>) attributes {dimension_semantics = [#tpu.dimension_semantics<parallel>], iteration_bounds = array<i64: 1>, scalar_prefetch = 0 : i64, scratch_operands = 0 : i64, tpu.core_type = #tpu.core_type<tc>, window_params = [{transform_indices = @transform_0, window_bounds = array<i64: 8, 16, 16>}, {transform_indices = @transform_1, window_bounds = array<i64: 1, 8, 128>}, {transform_indices = @transform_2, window_bounds = array<i64: 1, 8, 128>}]} {
    %c0 = arith.constant 0 : index
    %c0_0 = arith.constant 0 : index
    %c0_1 = arith.constant 0 : index
    %0 = vector.load %arg1[%c0, %c0_0, %c0_1] : memref<8x16x16xf32, #tpu.memory_space<vmem>>, vector<8x16x16xf32>
    %1 = vector.extract_strided_slice %0 {offsets = [0, 1, 0], sizes = [8, 15, 16], strides = [1, 1, 1]} : vector<8x16x16xf32> to vector<8x15x16xf32>
    %2 = vector.extract_strided_slice %0 {offsets = [0, 0, 0], sizes = [8, 15, 16], strides = [1, 1, 1]} : vector<8x16x16xf32> to vector<8x15x16xf32>
    %3 = arith.subf %1, %2 : vector<8x15x16xf32>
    %4 = arith.mulf %3, %3 : vector<8x15x16xf32>
    %5 = vector.shape_cast %4 : vector<8x15x16xf32> to vector<1x8x15x16xf32>
    %cst = arith.constant dense<0.000000e+00> : vector<1xf32>
    %6 = vector.multi_reduction <add>, %5, %cst [1, 2, 3] : vector<1x8x15x16xf32> to vector<1xf32>
    %7 = vector.shape_cast %6 : vector<1xf32> to vector<1x1x1x1xf32>
    %8 = vector.extract %7[0, 0, 0, 0] : f32 from vector<1x1x1x1xf32>
    %9 = vector.extract_strided_slice %0 {offsets = [0, 0, 1], sizes = [8, 16, 15], strides = [1, 1, 1]} : vector<8x16x16xf32> to vector<8x16x15xf32>
    %10 = vector.extract_strided_slice %0 {offsets = [0, 0, 0], sizes = [8, 16, 15], strides = [1, 1, 1]} : vector<8x16x16xf32> to vector<8x16x15xf32>
    %11 = arith.subf %9, %10 : vector<8x16x15xf32>
    %12 = arith.mulf %11, %11 : vector<8x16x15xf32>
    %13 = vector.shape_cast %12 : vector<8x16x15xf32> to vector<1x8x16x15xf32>
    %cst_2 = arith.constant dense<0.000000e+00> : vector<1xf32>
    %14 = vector.multi_reduction <add>, %13, %cst_2 [1, 2, 3] : vector<1x8x16x15xf32> to vector<1xf32>
    %15 = vector.shape_cast %14 : vector<1xf32> to vector<1x1x1x1xf32>
    %16 = vector.extract %15[0, 0, 0, 0] : f32 from vector<1x1x1x1xf32>
    %17 = vector.broadcast %8 : f32 to vector<1x8x128xf32>
    %c0_3 = arith.constant 0 : index
    %c0_4 = arith.constant 0 : index
    %c0_5 = arith.constant 0 : index
    %18 = vector.load %arg2[%c0_3, %c0_4, %c0_5] : memref<1x8x128xf32, #tpu.memory_space<vmem>>, vector<1x8x128xf32>
    tpu.vector_store %arg2[%c0_3, %c0_4, %c0_5], %17 {strides = array<i32>} : memref<1x8x128xf32, #tpu.memory_space<vmem>>, vector<1x8x128xf32>,
    %19 = vector.broadcast %16 : f32 to vector<1x8x128xf32>
    %c0_6 = arith.constant 0 : index
    %c0_7 = arith.constant 0 : index
    %c0_8 = arith.constant 0 : index
    %20 = vector.load %arg3[%c0_6, %c0_7, %c0_8] : memref<1x8x128xf32, #tpu.memory_space<vmem>>, vector<1x8x128xf32>
    tpu.vector_store %arg3[%c0_6, %c0_7, %c0_8], %19 {strides = array<i32>} : memref<1x8x128xf32, #tpu.memory_space<vmem>>, vector<1x8x128xf32>,
    return
  }
  func.func @transform_0(%arg0: i32) -> (i32, i32, i32) {
    %c0_i32 = arith.constant 0 : i32
    %c0_i32_0 = arith.constant 0 : i32
    %c0_i32_1 = arith.constant 0 : i32
    return %arg0, %c0_i32, %c0_i32_0 : i32, i32, i32
  }
  func.func @transform_1(%arg0: i32) -> (i32, i32, i32) {
    %c0_i32 = arith.constant 0 : i32
    %c0_i32_0 = arith.constant 0 : i32
    %c0_i32_1 = arith.constant 0 : i32
    return %arg0, %c0_i32, %c0_i32_0 : i32, i32, i32
  }
  func.func @transform_2(%arg0: i32) -> (i32, i32, i32) {
    %c0_i32 = arith.constant 0 : i32
    %c0_i32_0 = arith.constant 0 : i32
    %c0_i32_1 = arith.constant 0 : i32
    return %arg0, %c0_i32, %c0_i32_0 : i32, i32, i32
  }
}

</mosaic_0001>

<llo_original>
// kernel: tpu_custom_call.1
$region0: #{tpu_custom_call.1}
  #allocation0 [shape = 'u32[]', space=smem, size = 0x4, offset = 0x4, fixed_abs, tag = 'smem constant byte address 0x4 - core index']
  #allocation1 [shape = 'u32[144,128]{1,0:T(1,128)}', space=vmem, size = 0x12000, scoped, tag = 'internal scratch']
  %s0 = inlined_call_operand.hbm [shape: f32[8,16,16], index: 0, kind: input, shape index: {}]
  %s1 = inlined_call_operand.hbm [shape: f32[1,8,128], index: 1, kind: output, shape index: {0}]
  %s2 = inlined_call_operand.hbm [shape: f32[1,8,128], index: 2, kind: output, shape index: {1}]
  %3 = xla_tuple %s1, %s2
  %s4 = sld [smem:[#allocation0]]
  $region26: #{tpu_custom_call.1} parent=0
    _
  %s6 = ssub.s32 1, %s4
  %s7 = scalar_select 0, %s6, %s4
  $region1: #{tpu_custom_call.1} parent=0
    #allocation2 [shape = 'u8[65536]{0}', space=vmem, size = 0x10000, scoped, tag = 'input window, operand 0, single buffered']
    #allocation3 [shape = 's32[1]{0}', space=sflag, size = 0x4, scoped, tag = 'scoped memory for tpu_custom_call.1']
    #allocation4 [shape = 's32[1]{0}', space=sflag, size = 0x4, scoped, tag = 'scoped memory for tpu_custom_call.1']
    #allocation5 [shape = 'u8[4096]{0}', space=vmem, size = 0x1000, scoped, tag = 'output window, operand 0, single buffered']
    #allocation6 [shape = 'u8[4096]{0}', space=vmem, size = 0x1000, scoped, tag = 'output window, operand 1, single buffered']
    #allocation7 [shape = 's32[1]{0}', space=sflag, size = 0x4, scoped, tag = 'scoped memory for tpu_custom_call.1']
    %8 = vsyncpa [#allocation3], 0
    %9 = vsyncpa [#allocation4], 0
    %10 = vsyncpa [#allocation7], 0
    // Predicated region
    $region2: #{tpu_custom_call.1} parent=1 // pred_check
      _
    $region3: #{tpu_custom_call.1} parent=1 // pred_check_branch
      %12 = sbr.rel (0) target = $region5
    $region4: #{tpu_custom_call.1} parent=1 // pred_region
      %s14 = ssub.s32 2048, 2048
      %15 = vsyncadd [#allocation3], %s14
      %s16 = sshll.u32 [#allocation2], 4
      %s17 = int_to_ptr.vmem [resolvable:$true] %s16
      %22 = dma.hbm_to_vmem [thread:$0]  %s0, 2048, %s17, [#allocation3], 128, 128, 8
    $region5: #{tpu_custom_call.1} parent=1 // pred_fallthru
      _
    // Predicated region
    $region6: #{tpu_custom_call.1} parent=1 // pred_check
      _
    $region7: #{tpu_custom_call.1} parent=1 // pred_check_branch
      %24 = sbr.rel (0) target = $region9
    $region8: #{tpu_custom_call.1} parent=1 // pred_region
      %25 = dma.done [#allocation3], 2048
    $region9: #{tpu_custom_call.1} parent=1 // pred_fallthru
      _
    %v26 = vld [vmem:[#allocation2] sm:$0xff]
    %v27 = vld [vmem:[#allocation2 + $0x8] sm:$0xff]
    %v28 = vld [vmem:[#allocation2 + $0x10] sm:$0xff]
    %v29 = vld [vmem:[#allocation2 + $0x18] sm:$0xff]
    %v30 = vld [vmem:[#allocation2 + $0x20] sm:$0xff]
    %v31 = vld [vmem:[#allocation2 + $0x28] sm:$0xff]
    %v32 = vld [vmem:[#allocation2 + $0x30] sm:$0xff]
    %v33 = vld [vmem:[#allocation2 + $0x38] sm:$0xff]
    %v34 = vld [vmem:[#allocation2 + $0x40] sm:$0xff]
    %v35 = vld [vmem:[#allocation2 + $0x48] sm:$0xff]
    %v36 = vld [vmem:[#allocation2 + $0x50] sm:$0xff]
    %v37 = vld [vmem:[#allocation2 + $0x58] sm:$0xff]
    %v38 = vld [vmem:[#allocation2 + $0x60] sm:$0xff]
    %v39 = vld [vmem:[#allocation2 + $0x68] sm:$0xff]
    %v40 = vld [vmem:[#allocation2 + $0x70] sm:$0xff]
    %v41 = vld [vmem:[#allocation2 + $0x78] sm:$0xff]
    %vm58 = vcmask 1040384
    %v59 = vrot.slane %v26, 7
    %v60 = vrot.slane %v27, 7
    %v61 = vsel %vm58, %v59, %v60
    %v62 = vrot.slane %v28, 7
    %v63 = vrot.slane %v29, 7
    %v64 = vsel %vm58, %v62, %v63
    %v65 = vrot.slane %v30, 7
    %v66 = vrot.slane %v31, 7
    %v67 = vsel %vm58, %v65, %v66
    %v68 = vrot.slane %v32, 7
    %v69 = vrot.slane %v33, 7
    %v70 = vsel %vm58, %v68, %v69
    %v71 = vrot.slane %v34, 7
    %v72 = vrot.slane %v35, 7
    %v73 = vsel %vm58, %v71, %v72
    %v74 = vrot.slane %v36, 7
    %v75 = vrot.slane %v37, 7
    %v76 = vsel %vm58, %v74, %v75
    %v77 = vrot.slane %v38, 7
    %v78 = vrot.slane %v39, 7
    %v79 = vsel %vm58, %v77, %v78
    %v80 = vrot.slane %v40, 7
    %v81 = vrot.slane %v41, 7
    %v82 = vsel %vm58, %v80, %v81
    %v99 = vsub.f32 %v26, %v59
    %v100 = vsub.f32 %v27, %v61
    %v101 = vsub.f32 %v28, %v62
    %v102 = vsub.f32 %v29, %v64
    %v103 = vsub.f32 %v30, %v65
    %v104 = vsub.f32 %v31, %v67
    %v105 = vsub.f32 %v32, %v68
    %v106 = vsub.f32 %v33, %v70
    %v107 = vsub.f32 %v34, %v71
    %v108 = vsub.f32 %v35, %v73
    %v109 = vsub.f32 %v36, %v74
    %v110 = vsub.f32 %v37, %v76
    %v111 = vsub.f32 %v38, %v77
    %v112 = vsub.f32 %v39, %v79
    %v113 = vsub.f32 %v40, %v80
    %v114 = vsub.f32 %v41, %v82
    %v115 = vmul.f32 %v99, %v99
    %v116 = vmul.f32 %v100, %v100
    %v117 = vmul.f32 %v101, %v101
    %v118 = vmul.f32 %v102, %v102
    %v119 = vmul.f32 %v103, %v103
    %v120 = vmul.f32 %v104, %v104
    %v121 = vmul.f32 %v105, %v105
    %v122 = vmul.f32 %v106, %v106
    %v123 = vmul.f32 %v107, %v107
    %v124 = vmul.f32 %v108, %v108
    %v125 = vmul.f32 %v109, %v109
    %v126 = vmul.f32 %v110, %v110
    %v127 = vmul.f32 %v111, %v111
    %v128 = vmul.f32 %v112, %v112
    %v129 = vmul.f32 %v113, %v113
    %v130 = vmul.f32 %v114, %v114
    %vm147 = vcmask 1046528
    %v148 = vrot.slane %v115, 1
    %v149 = vrot.slane %v116, 1
    %v150 = vsel %vm147, %v148, %v149
    %v151 = vrot.slane %v117, 1
    %v152 = vrot.slane %v118, 1
    %v153 = vsel %vm147, %v151, %v152
    %v154 = vrot.slane %v119, 1
    %v155 = vrot.slane %v120, 1
    %v156 = vsel %vm147, %v154, %v155
    %v157 = vrot.slane %v121, 1
    %v158 = vrot.slane %v122, 1
    %v159 = vsel %vm147, %v157, %v158
    %v160 = vrot.slane %v123, 1
    %v161 = vrot.slane %v124, 1
    %v162 = vsel %vm147, %v160, %v161
    %v163 = vrot.slane %v125, 1
    %v164 = vrot.slane %v126, 1
    %v165 = vsel %vm147, %v163, %v164
    %v166 = vrot.slane %v127, 1
    %v167 = vrot.slane %v128, 1
    %v168 = vsel %vm147, %v166, %v167
    %v169 = vrot.slane %v129, 1
    %v170 = vrot.slane %v130, 1
    %v171 = vsel %vm147, %v169, %v170
    %vm188 = vcmask 130048
    %v189 = vsel %vm188, %v150, 0.0
    %vm190 = vcmask 129024
    %v191 = vsel %vm190, %v149, 0.0
    %v192 = vadd.f32 %v189, %v191
    %v193 = vsel %vm188, %v153, 0.0
    %v194 = vadd.f32 %v192, %v193
    %v195 = vsel %vm190, %v152, 0.0
    %v196 = vadd.f32 %v194, %v195
    %v197 = vsel %vm188, %v156, 0.0
    %v198 = vadd.f32 %v196, %v197
    %v199 = vsel %vm190, %v155, 0.0
    %v200 = vadd.f32 %v198, %v199
    %v201 = vsel %vm188, %v159, 0.0
    %v202 = vadd.f32 %v200, %v201
    %v203 = vsel %vm190, %v158, 0.0
    %v204 = vadd.f32 %v202, %v203
    %v205 = vsel %vm188, %v162, 0.0
    %v206 = vadd.f32 %v204, %v205
    %v207 = vsel %vm190, %v161, 0.0
    %v208 = vadd.f32 %v206, %v207
    %v209 = vsel %vm188, %v165, 0.0
    %v210 = vadd.f32 %v208, %v209
    %v211 = vsel %vm190, %v164, 0.0
    %v212 = vadd.f32 %v210, %v211
    %v213 = vsel %vm188, %v168, 0.0
    %v214 = vadd.f32 %v212, %v213
    %v215 = vsel %vm190, %v167, 0.0
    %v216 = vadd.f32 %v214, %v215
    %v217 = vsel %vm188, %v171, 0.0
    %v218 = vadd.f32 %v216, %v217
    %v219 = vsel %vm190, %v170, 0.0
    %v220 = vadd.f32 %v218, %v219
    %221 = vadd.xlane.f32.xlu0 %v220
    %v222 = vpop.xlane.xlu0 %221
    %v223 = vrot.slane %v222, 4
    %v224 = vadd.f32 %v222, %v223
    %v225 = vrot.slane %v224, 2
    %v226 = vadd.f32 %v224, %v225
    %v227 = vrot.slane %v226, 1
    %v228 = vadd.f32 %v226, %v227
    %s229 = vtos %v228
    %230 = vrot.lane.b32.xlu0 %v26, 1
    %v231 = vpop.permute.xlu0 %230
    %232 = vrot.lane.b32.xlu0 %v27, 1
    %v233 = vpop.permute.xlu0 %232
    %234 = vrot.lane.b32.xlu0 %v28, 1
    %v235 = vpop.permute.xlu0 %234
    %236 = vrot.lane.b32.xlu0 %v29, 1
    %v237 = vpop.permute.xlu0 %236
    %238 = vrot.lane.b32.xlu0 %v30, 1
    %v239 = vpop.permute.xlu0 %238
    %240 = vrot.lane.b32.xlu0 %v31, 1
    %v241 = vpop.permute.xlu0 %240
    %242 = vrot.lane.b32.xlu0 %v32, 1
    %v243 = vpop.permute.xlu0 %242
    %244 = vrot.lane.b32.xlu0 %v33, 1
    %v245 = vpop.permute.xlu0 %244
    %246 = vrot.lane.b32.xlu0 %v34, 1
    %v247 = vpop.permute.xlu0 %246
    %248 = vrot.lane.b32.xlu0 %v35, 1
    %v249 = vpop.permute.xlu0 %248
    %250 = vrot.lane.b32.xlu0 %v36, 1
    %v251 = vpop.permute.xlu0 %250
    %252 = vrot.lane.b32.xlu0 %v37, 1
    %v253 = vpop.permute.xlu0 %252
    %254 = vrot.lane.b32.xlu0 %v38, 1
    %v255 = vpop.permute.xlu0 %254
    %256 = vrot.lane.b32.xlu0 %v39, 1
    %v257 = vpop.permute.xlu0 %256
    %258 = vrot.lane.b32.xlu0 %v40, 1
    %v259 = vpop.permute.xlu0 %258
    %260 = vrot.lane.b32.xlu0 %v41, 1
    %v261 = vpop.permute.xlu0 %260
    %v278 = vsub.f32 %v26, %v231
    %v279 = vsub.f32 %v27, %v233
    %v280 = vsub.f32 %v28, %v235
    %v281 = vsub.f32 %v29, %v237
    %v282 = vsub.f32 %v30, %v239
    %v283 = vsub.f32 %v31, %v241
    %v284 = vsub.f32 %v32, %v243
    %v285 = vsub.f32 %v33, %v245
    %v286 = vsub.f32 %v34, %v247
    %v287 = vsub.f32 %v35, %v249
    %v288 = vsub.f32 %v36, %v251
    %v289 = vsub.f32 %v37, %v253
    %v290 = vsub.f32 %v38, %v255
    %v291 = vsub.f32 %v39, %v257
    %v292 = vsub.f32 %v40, %v259
    %v293 = vsub.f32 %v41, %v261
    %v294 = vmul.f32 %v278, %v278
    %v295 = vmul.f32 %v279, %v279
    %v296 = vmul.f32 %v280, %v280
    %v297 = vmul.f32 %v281, %v281
    %v298 = vmul.f32 %v282, %v282
    %v299 = vmul.f32 %v283, %v283
    %v300 = vmul.f32 %v284, %v284
    %v301 = vmul.f32 %v285, %v285
    %v302 = vmul.f32 %v286, %v286
    %v303 = vmul.f32 %v287, %v287
    %v304 = vmul.f32 %v288, %v288
    %v305 = vmul.f32 %v289, %v289
    %v306 = vmul.f32 %v290, %v290
    %v307 = vmul.f32 %v291, %v291
    %v308 = vmul.f32 %v292, %v292
    %v309 = vmul.f32 %v293, %v293
    %326 = vrot.lane.b32.xlu0 %v294, 127
    %v327 = vpop.permute.xlu0 %326
    %328 = vrot.lane.b32.xlu0 %v295, 127
    %v329 = vpop.permute.xlu0 %328
    %330 = vrot.lane.b32.xlu0 %v296, 127
    %v331 = vpop.permute.xlu0 %330
    %332 = vrot.lane.b32.xlu0 %v297, 127
    %v333 = vpop.permute.xlu0 %332
    %334 = vrot.lane.b32.xlu0 %v298, 127
    %v335 = vpop.permute.xlu0 %334
    %336 = vrot.lane.b32.xlu0 %v299, 127
    %v337 = vpop.permute.xlu0 %336
    %338 = vrot.lane.b32.xlu0 %v300, 127
    %v339 = vpop.permute.xlu0 %338
    %340 = vrot.lane.b32.xlu0 %v301, 127
    %v341 = vpop.permute.xlu0 %340
    %342 = vrot.lane.b32.xlu0 %v302, 127
    %v343 = vpop.permute.xlu0 %342
    %344 = vrot.lane.b32.xlu0 %v303, 127
    %v345 = vpop.permute.xlu0 %344
    %346 = vrot.lane.b32.xlu0 %v304, 127
    %v347 = vpop.permute.xlu0 %346
    %348 = vrot.lane.b32.xlu0 %v305, 127
    %v349 = vpop.permute.xlu0 %348
    %350 = vrot.lane.b32.xlu0 %v306, 127
    %v351 = vpop.permute.xlu0 %350
    %352 = vrot.lane.b32.xlu0 %v307, 127
    %v353 = vpop.permute.xlu0 %352
    %354 = vrot.lane.b32.xlu0 %v308, 127
    %v355 = vpop.permute.xlu0 %354
    %356 = vrot.lane.b32.xlu0 %v309, 127
    %v357 = vpop.permute.xlu0 %356
    %vm374 = vcmask 121856
    %v375 = vsel %vm374, %v327, 0.0
    %v376 = vsel %vm374, %v329, 0.0
    %v377 = vadd.f32 %v375, %v376
    %v378 = vsel %vm374, %v331, 0.0
    %v379 = vadd.f32 %v377, %v378
    %v380 = vsel %vm374, %v333, 0.0
    %v381 = vadd.f32 %v379, %v380
    %v382 = vsel %vm374, %v335, 0.0
    %v383 = vadd.f32 %v381, %v382
    %v384 = vsel %vm374, %v337, 0.0
    %v385 = vadd.f32 %v383, %v384
    %v386 = vsel %vm374, %v339, 0.0
    %v387 = vadd.f32 %v385, %v386
    %v388 = vsel %vm374, %v341, 0.0
    %v389 = vadd.f32 %v387, %v388
    %v390 = vsel %vm374, %v343, 0.0
    %v391 = vadd.f32 %v389, %v390
    %v392 = vsel %vm374, %v345, 0.0
    %v393 = vadd.f32 %v391, %v392
    %v394 = vsel %vm374, %v347, 0.0
    %v395 = vadd.f32 %v393, %v394
    %v396 = vsel %vm374, %v349, 0.0
    %v397 = vadd.f32 %v395, %v396
    %v398 = vsel %vm374, %v351, 0.0
    %v399 = vadd.f32 %v397, %v398
    %v400 = vsel %vm374, %v353, 0.0
    %v401 = vadd.f32 %v399, %v400
    %v402 = vsel %vm374, %v355, 0.0
    %v403 = vadd.f32 %v401, %v402
    %v404 = vsel %vm374, %v357, 0.0
    %v405 = vadd.f32 %v403, %v404
    %406 = vadd.xlane.f32.xlu0 %v405
    %v407 = vpop.xlane.xlu0 %406
    %v408 = vrot.slane %v407, 4
    %v409 = vadd.f32 %v407, %v408
    %v410 = vrot.slane %v409, 2
    %v411 = vadd.f32 %v409, %v410
    %v412 = vrot.slane %v411, 1
    %v413 = vadd.f32 %v411, %v412
    %s414 = vtos %v413
    %v415 = vstv %s229
    %416 = vst [vmem:[#allocation5] sm:$0xff] %v415
    %v417 = vstv %s414
    %418 = vst [vmem:[#allocation6] sm:$0xff] %v417
    // Predicated region
    $region10: #{tpu_custom_call.1} parent=1 // pred_check
      _
    $region11: #{tpu_custom_call.1} parent=1 // pred_check_branch
      %420 = sbr.rel (0) target = $region13
    $region12: #{tpu_custom_call.1} parent=1 // pred_region
      %s422 = ssub.s32 128, 128
      %423 = vsyncadd [#allocation4], %s422
      %s425 = sshll.u32 [#allocation5], 4
      %s426 = int_to_ptr.vmem [resolvable:$true] %s425
      %428 = dma.vmem_to_hbm [thread:$0]  %s426, 128, %s1, [#allocation4]
    $region13: #{tpu_custom_call.1} parent=1 // pred_fallthru
      _
    // Predicated region
    $region14: #{tpu_custom_call.1} parent=1 // pred_check
      _
    $region15: #{tpu_custom_call.1} parent=1 // pred_check_branch
      %430 = sbr.rel (0) target = $region17
    $region16: #{tpu_custom_call.1} parent=1 // pred_region
      %s432 = ssub.s32 128, 128
      %433 = vsyncadd [#allocation7], %s432
      %s435 = sshll.u32 [#allocation6], 4
      %s436 = int_to_ptr.vmem [resolvable:$true] %s435
      %438 = dma.vmem_to_hbm [thread:$0]  %s436, 128, %s2, [#allocation7]
    $region17: #{tpu_custom_call.1} parent=1 // pred_fallthru
      _
    // Predicated region
    $region18: #{tpu_custom_call.1} parent=1 // pred_check
      _
    $region19: #{tpu_custom_call.1} parent=1 // pred_check_branch
      %440 = sbr.rel (0) target = $region21
    $region20: #{tpu_custom_call.1} parent=1 // pred_region
      %441 = dma.done [#allocation4], 128
    $region21: #{tpu_custom_call.1} parent=1 // pred_fallthru
      _
    // Predicated region
    $region22: #{tpu_custom_call.1} parent=1 // pred_check
      _
    $region23: #{tpu_custom_call.1} parent=1 // pred_check_branch
      %443 = sbr.rel (0) target = $region25
    $region24: #{tpu_custom_call.1} parent=1 // pred_region
      %444 = dma.done [#allocation7], 128
    $region25: #{tpu_custom_call.1} parent=1 // pred_fallthru
      _
    %445 = vsyncpa [#allocation3], 1
    %446 = vsyncpa [#allocation4], 1
    %447 = vsyncpa [#allocation7], 1

</llo_original>
